<compile_context>
chip_gen: v6e
topology: v6e:2x2x1
jax: 0.10.0
libtpu: 0.0.40
codegen_flags: <defaults>
</compile_context>

<pallas_src>
import jax
import jax.numpy as jnp
from jax.experimental import pallas as pl
from jax.experimental.pallas import tpu as pltpu

QUANT_MIN = 0
QUANT_MAX = 255
AVERAGING_CONSTANT = 0.01          # MovingAverageMinMaxObserver default
EPS = float(jnp.finfo(jnp.float32).eps)


def _round_up(a, b):
    return ((a + b - 1) // b) * b


def _choose_layout(total):
    """Lane-dense 2D slab (rows, cols) + tile_rows so tiles are ~<=1 MiB f32."""
    cols = 512 if total >= 8 * 512 else 128
    rows_needed = max(1, (total + cols - 1) // cols)
    tile_rows = min(512, _round_up(rows_needed, 8))
    rows = _round_up(rows_needed, tile_rows)
    return rows, cols, tile_rows


# ---------------------------------------------------------------------------
# Pass 1: observer reduction + qparams (reduction grid axis, "arbitrary")
# ---------------------------------------------------------------------------
def fq_observe_kernel(rmin_ref, rmax_ref, x_ref,
                      scale_ref, zp_ref, inv_ref, nmin_ref, nmax_ref,
                      cmin_sc, cmax_sc):
    i = pl.program_id(0)

    @pl.when(i == 0)
    def _():
        cmin_sc[...] = jnp.full((1, 1), jnp.inf, jnp.float32)
        cmax_sc[...] = jnp.full((1, 1), -jnp.inf, jnp.float32)

    x = x_ref[...]                                           # (tile_rows, cols) f32
    cmin_sc[...] = jnp.minimum(cmin_sc[...], jnp.min(x, keepdims=True))
    cmax_sc[...] = jnp.maximum(cmax_sc[...], jnp.max(x, keepdims=True))

    @pl.when(i == pl.num_programs(0) - 1)
    def _():
        cur_min = cmin_sc[...]                               # (1, 1)
        cur_max = cmax_sc[...]
        rmin = jnp.broadcast_to(rmin_ref[0, 0], (1, 1))      # running min (+inf if fresh)
        rmax = jnp.broadcast_to(rmax_ref[0, 0], (1, 1))      # running max (-inf if fresh)

        new_min = jnp.where(jnp.isinf(rmin), cur_min,
                            rmin + AVERAGING_CONSTANT * (cur_min - rmin))
        new_max = jnp.where(jnp.isinf(rmax), cur_max,
                            rmax + AVERAGING_CONSTANT * (cur_max - rmax))

        # calculate_qparams (per-tensor affine, quint8-style range)
        min_neg = jnp.minimum(new_min, 0.0)
        max_pos = jnp.maximum(new_max, 0.0)
        scale = jnp.maximum((max_pos - min_neg) / float(QUANT_MAX - QUANT_MIN), EPS)
        zp = jnp.clip(QUANT_MIN - jnp.round(min_neg / scale),
                      float(QUANT_MIN), float(QUANT_MAX))

        scale_ref[...] = scale
        zp_ref[...] = zp
        inv_ref[...] = 1.0 / scale                           # scalar reciprocal, once
        nmin_ref[...] = new_min
        nmax_ref[...] = new_max


# ---------------------------------------------------------------------------
# Pass 2: elementwise fake quantize ("parallel" grid axis, lane-dense tiles)
# ---------------------------------------------------------------------------
def fq_apply_kernel(scale_ref, zp_ref, inv_ref, x_ref, o_ref):
    scale = scale_ref[0, 0]                                  # SMEM scalars
    zp = zp_ref[0, 0]
    inv_scale = inv_ref[0, 0]
    x = x_ref[...]
    q = jnp.clip(jnp.round(x * inv_scale + zp),
                 float(QUANT_MIN), float(QUANT_MAX))
    o_ref[...] = ((q - zp) * scale).astype(o_ref.dtype)


# ---------------------------------------------------------------------------
# Wrapper
# ---------------------------------------------------------------------------
def _fake_quantize_impl(x_nchw, running_min, running_max):
    orig_shape = x_nchw.shape
    total = 1
    for d in orig_shape:
        total *= d

    rows, cols, tile_rows = _choose_layout(total)
    padded = rows * cols

    x_flat = x_nchw.reshape(-1).astype(jnp.float32)
    if padded > total:
        # Pad with a real data value so min/max (observer state) are unchanged.
        fill = x_flat[0]
        x_flat = jnp.concatenate(
            [x_flat, jnp.full((padded - total,), 1.0, jnp.float32) * fill])
    x2d = x_flat.reshape(rows, cols)

    num_tiles = rows // tile_rows
    x_spec = pl.BlockSpec((tile_rows, cols), lambda i: (i, 0))
    smem_spec = pl.BlockSpec(memory_space=pltpu.MemorySpace.SMEM)
    one_spec = pl.BlockSpec((1, 1), lambda i: (0, 0))
    s11 = jax.ShapeDtypeStruct((1, 1), jnp.float32)

    # ---- pass 1: tiled min/max reduction + qparams -------------------------
    scale, zp, inv_scale, nmin, nmax = pl.pallas_call(
        fq_observe_kernel,
        grid=(num_tiles,),
        out_shape=(s11, s11, s11, s11, s11),
        in_specs=[smem_spec, smem_spec, x_spec],
        out_specs=(one_spec, one_spec, one_spec, one_spec, one_spec),
        scratch_shapes=[pltpu.VMEM((1, 1), jnp.float32),
                        pltpu.VMEM((1, 1), jnp.float32)],
        compiler_params=pltpu.CompilerParams(
            dimension_semantics=("arbitrary",)),
    )(running_min.astype(jnp.float32), running_max.astype(jnp.float32), x2d)

    # ---- pass 2: tiled elementwise fake quant -------------------------------
    xq2d = pl.pallas_call(
        fq_apply_kernel,
        grid=(num_tiles,),
        out_shape=jax.ShapeDtypeStruct((rows, cols), jnp.float32),
        in_specs=[smem_spec, smem_spec, smem_spec, x_spec],
        out_specs=x_spec,
        compiler_params=pltpu.CompilerParams(
            dimension_semantics=("parallel",)),
    )(scale, zp, inv_scale, x2d)

    xq = xq2d.reshape(-1)[:total].reshape(orig_shape)
    return xq, scale[0, 0], zp[0, 0].astype(jnp.int32), nmin, nmax


fake_quantize = jax.jit(_fake_quantize_impl)


# ---------------------------------------------------------------------------
# Pure-JAX reference (same math as torch fake_quantize_per_tensor_affine path)
# ---------------------------------------------------------------------------
def _reference(x, running_min, running_max):
    cur_min, cur_max = jnp.min(x), jnp.max(x)
    rmin, rmax = running_min[0, 0], running_max[0, 0]
    new_min = jnp.where(jnp.isinf(rmin), cur_min,
                        rmin + AVERAGING_CONSTANT * (cur_min - rmin))
    new_max = jnp.where(jnp.isinf(rmax), cur_max,
                        rmax + AVERAGING_CONSTANT * (cur_max - rmax))
    min_neg = jnp.minimum(new_min, 0.0)
    max_pos = jnp.maximum(new_max, 0.0)
    scale = jnp.maximum((max_pos - min_neg) / float(QUANT_MAX - QUANT_MIN), EPS)
    zp = jnp.clip(QUANT_MIN - jnp.round(min_neg / scale),
                  float(QUANT_MIN), float(QUANT_MAX))
    inv_scale = 1.0 / scale
    q = jnp.clip(jnp.round(x * inv_scale + zp),
                 float(QUANT_MIN), float(QUANT_MAX))
    return (q - zp) * scale, scale, zp, new_min, new_max


if __name__ == "__main__":
    key = jax.random.PRNGKey(0)
    x = jax.random.normal(key, (2, 4, 16, 16), dtype=jnp.float32) * 3.0 + 0.5

    # Fresh observer state (buffers of FakeQuantize / its observer).
    running_min = jnp.full((1, 1), jnp.inf, dtype=jnp.float32)
    running_max = jnp.full((1, 1), -jnp.inf, dtype=jnp.float32)

    xq, scale, zp, nmin, nmax = fake_quantize(x, running_min, running_max)
    jax.block_until_ready((xq, scale, zp, nmin, nmax))

    ref_xq, ref_scale, ref_zp, ref_min, ref_max = _reference(x, running_min, running_max)
    assert jnp.allclose(xq, ref_xq, atol=1e-5, rtol=1e-5)
    assert jnp.allclose(scale, ref_scale, atol=1e-7, rtol=1e-6)
    assert int(zp) == int(ref_zp)
    assert jnp.allclose(nmin[0, 0], ref_min, atol=1e-6)
    assert jnp.allclose(nmax[0, 0], ref_max, atol=1e-6)

    # Second call exercises the moving-average (non-fresh observer) branch.
    xq2, scale2, zp2, nmin2, nmax2 = fake_quantize(x * 0.5, nmin, nmax)
    jax.block_until_ready((xq2, scale2, zp2, nmin2, nmax2))
    ref_xq2, ref_scale2, ref_zp2, _, _ = _reference(x * 0.5, nmin, nmax)
    assert jnp.allclose(xq2, ref_xq2, atol=1e-5, rtol=1e-5)
    assert jnp.allclose(scale2, ref_scale2, atol=1e-7, rtol=1e-6)
    assert int(zp2) == int(ref_zp2)

    print("KERNEL_OK")
</pallas_src>

<mosaic_0001>
module attributes {stable_mosaic.version = 11 : i64} {
  func.func @fq_observe_kernel(%arg0: i32, %arg1: memref<1x1xf32, #tpu.memory_space<smem>>, %arg2: memref<1x1xf32, #tpu.memory_space<smem>>, %arg3: memref<16x128xf32, #tpu.memory_space<vmem>>, %arg4: memref<1x1xf32, #tpu.memory_space<vmem>>, %arg5: memref<1x1xf32, #tpu.memory_space<vmem>>, %arg6: memref<1x1xf32, #tpu.memory_space<vmem>>, %arg7: memref<1x1xf32, #tpu.memory_space<vmem>>, %arg8: memref<1x1xf32, #tpu.memory_space<vmem>>, %arg9: memref<1x1xf32, #tpu.memory_space<vmem>>, %arg10: memref<1x1xf32, #tpu.memory_space<vmem>>) attributes {dimension_semantics = [#tpu.dimension_semantics<arbitrary>], iteration_bounds = array<i64: 1>, scalar_prefetch = 0 : i64, scratch_operands = 2 : i64, tpu.core_type = #tpu.core_type<tc>, window_params = [{transform_indices = @transform_0, window_bounds = array<i64: 1, 1>}, {transform_indices = @transform_1, window_bounds = array<i64: 1, 1>}, {transform_indices = @transform_2, window_bounds = array<i64: 16, 128>}, {pipeline_mode = #tpu.pipeline_mode<synchronous>, transform_indices = @transform_3, window_bounds = array<i64: 1, 1>}, {pipeline_mode = #tpu.pipeline_mode<synchronous>, transform_indices = @transform_4, window_bounds = array<i64: 1, 1>}, {pipeline_mode = #tpu.pipeline_mode<synchronous>, transform_indices = @transform_5, window_bounds = array<i64: 1, 1>}, {pipeline_mode = #tpu.pipeline_mode<synchronous>, transform_indices = @transform_6, window_bounds = array<i64: 1, 1>}, {pipeline_mode = #tpu.pipeline_mode<synchronous>, transform_indices = @transform_7, window_bounds = array<i64: 1, 1>}]} {
    %c0_i32 = arith.constant 0 : i32
    %0 = arith.cmpi eq, %arg0, %c0_i32 : i32
    %1 = arith.extui %0 : i1 to i32
    %c0_i32_0 = arith.constant 0 : i32
    %2 = arith.cmpi ne, %1, %c0_i32_0 : i32
    scf.if %2 {
      %cst_13 = arith.constant 0x7F800000 : f32
      %23 = vector.broadcast %cst_13 : f32 to vector<1x1xf32>
      %c0_14 = arith.constant 0 : index
      %c0_15 = arith.constant 0 : index
      %24 = vector.load %arg9[%c0_14, %c0_15] : memref<1x1xf32, #tpu.memory_space<vmem>>, vector<1x1xf32>
      tpu.vector_store %arg9[%c0_14, %c0_15], %23 {strides = array<i32>} : memref<1x1xf32, #tpu.memory_space<vmem>>, vector<1x1xf32>,
      %cst_16 = arith.constant 0xFF800000 : f32
      %25 = vector.broadcast %cst_16 : f32 to vector<1x1xf32>
      %c0_17 = arith.constant 0 : index
      %c0_18 = arith.constant 0 : index
      %26 = vector.load %arg10[%c0_17, %c0_18] : memref<1x1xf32, #tpu.memory_space<vmem>>, vector<1x1xf32>
      tpu.vector_store %arg10[%c0_17, %c0_18], %25 {strides = array<i32>} : memref<1x1xf32, #tpu.memory_space<vmem>>, vector<1x1xf32>,
    } else {
    }
    %c0 = arith.constant 0 : index
    %c0_1 = arith.constant 0 : index
    %3 = vector.load %arg3[%c0, %c0_1] : memref<16x128xf32, #tpu.memory_space<vmem>>, vector<16x128xf32>
    %c0_2 = arith.constant 0 : index
    %c0_3 = arith.constant 0 : index
    %4 = vector.load %arg9[%c0_2, %c0_3] : memref<1x1xf32, #tpu.memory_space<vmem>>, vector<1x1xf32>
    %5 = vector.shape_cast %3 : vector<16x128xf32> to vector<1x16x128xf32>
    %cst = arith.constant dense<0x7F800000> : vector<1xf32>
    %6 = vector.multi_reduction <minimumf>, %5, %cst [1, 2] : vector<1x16x128xf32> to vector<1xf32>
    %7 = vector.shape_cast %6 : vector<1xf32> to vector<1x1x1xf32>
    %8 = vector.extract %7[0, 0, 0] : f32 from vector<1x1x1xf32>
    %9 = vector.broadcast %8 : f32 to vector<1x1xf32>
    %10 = arith.minimumf %4, %9 : vector<1x1xf32>
    %c0_4 = arith.constant 0 : index
    %c0_5 = arith.constant 0 : index
    %11 = vector.load %arg9[%c0_4, %c0_5] : memref<1x1xf32, #tpu.memory_space<vmem>>, vector<1x1xf32>
    tpu.vector_store %arg9[%c0_4, %c0_5], %10 {strides = array<i32>} : memref<1x1xf32, #tpu.memory_space<vmem>>, vector<1x1xf32>,
    %c0_6 = arith.constant 0 : index
    %c0_7 = arith.constant 0 : index
    %12 = vector.load %arg10[%c0_6, %c0_7] : memref<1x1xf32, #tpu.memory_space<vmem>>, vector<1x1xf32>
    %13 = vector.shape_cast %3 : vector<16x128xf32> to vector<1x16x128xf32>
    %cst_8 = arith.constant dense<0xFF800000> : vector<1xf32>
    %14 = vector.multi_reduction <maximumf>, %13, %cst_8 [1, 2] : vector<1x16x128xf32> to vector<1xf32>
    %15 = vector.shape_cast %14 : vector<1xf32> to vector<1x1x1xf32>
    %16 = vector.extract %15[0, 0, 0] : f32 from vector<1x1x1xf32>
    %17 = vector.broadcast %16 : f32 to vector<1x1xf32>
    %18 = arith.maximumf %12, %17 : vector<1x1xf32>
    %c0_9 = arith.constant 0 : index
    %c0_10 = arith.constant 0 : index
    %19 = vector.load %arg10[%c0_9, %c0_10] : memref<1x1xf32, #tpu.memory_space<vmem>>, vector<1x1xf32>
    tpu.vector_store %arg10[%c0_9, %c0_10], %18 {strides = array<i32>} : memref<1x1xf32, #tpu.memory_space<vmem>>, vector<1x1xf32>,
    %c0_i32_11 = arith.constant 0 : i32
    %20 = arith.cmpi eq, %arg0, %c0_i32_11 : i32
    %21 = arith.extui %20 : i1 to i32
    %c0_i32_12 = arith.constant 0 : i32
    %22 = arith.cmpi ne, %21, %c0_i32_12 : i32
    scf.if %22 {
      %c0_13 = arith.constant 0 : index
      %c0_14 = arith.constant 0 : index
      %23 = vector.load %arg9[%c0_13, %c0_14] : memref<1x1xf32, #tpu.memory_space<vmem>>, vector<1x1xf32>
      %c0_15 = arith.constant 0 : index
      %c0_16 = arith.constant 0 : index
      %24 = vector.load %arg10[%c0_15, %c0_16] : memref<1x1xf32, #tpu.memory_space<vmem>>, vector<1x1xf32>
      %c0_17 = arith.constant 0 : index
      %c0_18 = arith.constant 0 : index
      %25 = memref.load %arg1[%c0_17, %c0_18] : memref<1x1xf32, #tpu.memory_space<smem>>
      %26 = vector.broadcast %25 : f32 to vector<1x1xf32>
      %c0_19 = arith.constant 0 : index
      %c0_20 = arith.constant 0 : index
      %27 = memref.load %arg2[%c0_19, %c0_20] : memref<1x1xf32, #tpu.memory_space<smem>>
      %28 = vector.broadcast %27 : f32 to vector<1x1xf32>
      %29 = math.absf %26 : vector<1x1xf32>
      %cst_21 = arith.constant 0x7F800000 : f32
      %30 = vector.broadcast %cst_21 : f32 to vector<1x1xf32>
      %31 = arith.cmpf oeq, %29, %30 : vector<1x1xf32>
      %32 = arith.subf %23, %26 : vector<1x1xf32>
      %cst_22 = arith.constant 0.00999999977 : f32
      %33 = vector.broadcast %cst_22 : f32 to vector<1x1xf32>
      %34 = arith.mulf %33, %32 : vector<1x1xf32>
      %35 = arith.addf %26, %34 : vector<1x1xf32>
      %36 = arith.select %31, %23, %35 : vector<1x1xi1>, vector<1x1xf32>
      %37 = math.absf %28 : vector<1x1xf32>
      %cst_23 = arith.constant 0x7F800000 : f32
      %38 = vector.broadcast %cst_23 : f32 to vector<1x1xf32>
      %39 = arith.cmpf oeq, %37, %38 : vector<1x1xf32>
      %40 = arith.subf %24, %28 : vector<1x1xf32>
      %cst_24 = arith.constant 0.00999999977 : f32
      %41 = vector.broadcast %cst_24 : f32 to vector<1x1xf32>
      %42 = arith.mulf %41, %40 : vector<1x1xf32>
      %43 = arith.addf %28, %42 : vector<1x1xf32>
      %44 = arith.select %39, %24, %43 : vector<1x1xi1>, vector<1x1xf32>
      %cst_25 = arith.constant 0.000000e+00 : f32
      %45 = vector.broadcast %cst_25 : f32 to vector<1x1xf32>
      %46 = arith.minimumf %36, %45 : vector<1x1xf32>
      %cst_26 = arith.constant 0.000000e+00 : f32
      %47 = vector.broadcast %cst_26 : f32 to vector<1x1xf32>
      %48 = arith.maximumf %44, %47 : vector<1x1xf32>
      %49 = arith.subf %48, %46 : vector<1x1xf32>
      %cst_27 = arith.constant 2.550000e+02 : f32
      %50 = vector.broadcast %cst_27 : f32 to vector<1x1xf32>
      %51 = arith.divf %49, %50 : vector<1x1xf32>
      %cst_28 = arith.constant 1.1920929E-7 : f32
      %52 = vector.broadcast %cst_28 : f32 to vector<1x1xf32>
      %53 = arith.maximumf %51, %52 : vector<1x1xf32>
      %54 = arith.divf %46, %53 : vector<1x1xf32>
      %55 = math.roundeven %54 : vector<1x1xf32>
      %cst_29 = arith.constant 0.000000e+00 : f32
      %56 = vector.broadcast %cst_29 : f32 to vector<1x1xf32>
      %57 = arith.subf %56, %55 : vector<1x1xf32>
      %cst_30 = arith.constant 0.000000e+00 : f32
      %cst_31 = arith.constant 2.550000e+02 : f32
      %58 = vector.broadcast %cst_30 : f32 to vector<1x1xf32>
      %59 = arith.maximumf %58, %57 : vector<1x1xf32>
      %60 = vector.broadcast %cst_31 : f32 to vector<1x1xf32>
      %61 = arith.minimumf %60, %59 : vector<1x1xf32>
      %c0_32 = arith.constant 0 : index
      %c0_33 = arith.constant 0 : index
      %62 = vector.load %arg4[%c0_32, %c0_33] : memref<1x1xf32, #tpu.memory_space<vmem>>, vector<1x1xf32>
      tpu.vector_store %arg4[%c0_32, %c0_33], %53 {strides = array<i32>} : memref<1x1xf32, #tpu.memory_space<vmem>>, vector<1x1xf32>,
      %c0_34 = arith.constant 0 : index
      %c0_35 = arith.constant 0 : index
      %63 = vector.load %arg5[%c0_34, %c0_35] : memref<1x1xf32, #tpu.memory_space<vmem>>, vector<1x1xf32>
      tpu.vector_store %arg5[%c0_34, %c0_35], %61 {strides = array<i32>} : memref<1x1xf32, #tpu.memory_space<vmem>>, vector<1x1xf32>,
      %cst_36 = arith.constant 1.000000e+00 : f32
      %64 = vector.broadcast %cst_36 : f32 to vector<1x1xf32>
      %65 = arith.divf %64, %53 : vector<1x1xf32>
      %c0_37 = arith.constant 0 : index
      %c0_38 = arith.constant 0 : index
      %66 = vector.load %arg6[%c0_37, %c0_38] : memref<1x1xf32, #tpu.memory_space<vmem>>, vector<1x1xf32>
      tpu.vector_store %arg6[%c0_37, %c0_38], %65 {strides = array<i32>} : memref<1x1xf32, #tpu.memory_space<vmem>>, vector<1x1xf32>,
      %c0_39 = arith.constant 0 : index
      %c0_40 = arith.constant 0 : index
      %67 = vector.load %arg7[%c0_39, %c0_40] : memref<1x1xf32, #tpu.memory_space<vmem>>, vector<1x1xf32>
      tpu.vector_store %arg7[%c0_39, %c0_40], %36 {strides = array<i32>} : memref<1x1xf32, #tpu.memory_space<vmem>>, vector<1x1xf32>,
      %c0_41 = arith.constant 0 : index
      %c0_42 = arith.constant 0 : index
      %68 = vector.load %arg8[%c0_41, %c0_42] : memref<1x1xf32, #tpu.memory_space<vmem>>, vector<1x1xf32>
      tpu.vector_store %arg8[%c0_41, %c0_42], %44 {strides = array<i32>} : memref<1x1xf32, #tpu.memory_space<vmem>>, vector<1x1xf32>,
    } else {
    }
    return
  }
  func.func @transform_0(%arg0: i32) -> (i32, i32) {
    %c0_i32 = arith.constant 0 : i32
    %c0_i32_0 = arith.constant 0 : i32
    %c0_i32_1 = arith.constant 0 : i32
    return %c0_i32, %c0_i32_0 : i32, i32
  }
  func.func @transform_1(%arg0: i32) -> (i32, i32) {
    %c0_i32 = arith.constant 0 : i32
    %c0_i32_0 = arith.constant 0 : i32
    %c0_i32_1 = arith.constant 0 : i32
    return %c0_i32, %c0_i32_0 : i32, i32
  }
  func.func @transform_2(%arg0: i32) -> (i32, i32) {
    %c0_i32 = arith.constant 0 : i32
    %c0_i32_0 = arith.constant 0 : i32
    return %arg0, %c0_i32 : i32, i32
  }
  func.func @transform_3(%arg0: i32) -> (i32, i32) {
    %c0_i32 = arith.constant 0 : i32
    %c0_i32_0 = arith.constant 0 : i32
    %c0_i32_1 = arith.constant 0 : i32
    return %c0_i32, %c0_i32_0 : i32, i32
  }
  func.func @transform_4(%arg0: i32) -> (i32, i32) {
    %c0_i32 = arith.constant 0 : i32
    %c0_i32_0 = arith.constant 0 : i32
    %c0_i32_1 = arith.constant 0 : i32
    return %c0_i32, %c0_i32_0 : i32, i32
  }
  func.func @transform_5(%arg0: i32) -> (i32, i32) {
    %c0_i32 = arith.constant 0 : i32
    %c0_i32_0 = arith.constant 0 : i32
    %c0_i32_1 = arith.constant 0 : i32
    return %c0_i32, %c0_i32_0 : i32, i32
  }
  func.func @transform_6(%arg0: i32) -> (i32, i32) {
    %c0_i32 = arith.constant 0 : i32
    %c0_i32_0 = arith.constant 0 : i32
    %c0_i32_1 = arith.constant 0 : i32
    return %c0_i32, %c0_i32_0 : i32, i32
  }
  func.func @transform_7(%arg0: i32) -> (i32, i32) {
    %c0_i32 = arith.constant 0 : i32
    %c0_i32_0 = arith.constant 0 : i32
    %c0_i32_1 = arith.constant 0 : i32
    return %c0_i32, %c0_i32_0 : i32, i32
  }
}

module attributes {stable_mosaic.version = 11 : i64} {
  func.func @fq_apply_kernel(%arg0: i32, %arg1: memref<1x1xf32, #tpu.memory_space<smem>>, %arg2: memref<1x1xf32, #tpu.memory_space<smem>>, %arg3: memref<1x1xf32, #tpu.memory_space<smem>>, %arg4: memref<16x128xf32, #tpu.memory_space<vmem>>, %arg5: memref<16x128xf32, #tpu.memory_space<vmem>>) attributes {dimension_semantics = [#tpu.dimension_semantics<parallel>], iteration_bounds = array<i64: 1>, scalar_prefetch = 0 : i64, scratch_operands = 0 : i64, tpu.core_type = #tpu.core_type<tc>, window_params = [{transform_indices = @transform_0, window_bounds = array<i64: 1, 1>}, {transform_indices = @transform_1, window_bounds = array<i64: 1, 1>}, {transform_indices = @transform_2, window_bounds = array<i64: 1, 1>}, {transform_indices = @transform_3, window_bounds = array<i64: 16, 128>}, {transform_indices = @transform_4, window_bounds = array<i64: 16, 128>}]} {
    %c0 = arith.constant 0 : index
    %c0_0 = arith.constant 0 : index
    %0 = memref.load %arg1[%c0, %c0_0] : memref<1x1xf32, #tpu.memory_space<smem>>
    %c0_1 = arith.constant 0 : index
    %c0_2 = arith.constant 0 : index
    %1 = memref.load %arg2[%c0_1, %c0_2] : memref<1x1xf32, #tpu.memory_space<smem>>
    %c0_3 = arith.constant 0 : index
    %c0_4 = arith.constant 0 : index
    %2 = memref.load %arg3[%c0_3, %c0_4] : memref<1x1xf32, #tpu.memory_space<smem>>
    %c0_5 = arith.constant 0 : index
    %c0_6 = arith.constant 0 : index
    %3 = vector.load %arg4[%c0_5, %c0_6] : memref<16x128xf32, #tpu.memory_space<vmem>>, vector<16x128xf32>
    %4 = vector.broadcast %2 : f32 to vector<16x128xf32>
    %5 = arith.mulf %3, %4 : vector<16x128xf32>
    %6 = vector.broadcast %1 : f32 to vector<16x128xf32>
    %7 = arith.addf %5, %6 : vector<16x128xf32>
    %8 = math.roundeven %7 : vector<16x128xf32>
    %cst = arith.constant 0.000000e+00 : f32
    %cst_7 = arith.constant 2.550000e+02 : f32
    %9 = vector.broadcast %cst : f32 to vector<16x128xf32>
    %10 = arith.maximumf %9, %8 : vector<16x128xf32>
    %11 = vector.broadcast %cst_7 : f32 to vector<16x128xf32>
    %12 = arith.minimumf %11, %10 : vector<16x128xf32>
    %13 = vector.broadcast %1 : f32 to vector<16x128xf32>
    %14 = arith.subf %12, %13 : vector<16x128xf32>
    %15 = vector.broadcast %0 : f32 to vector<16x128xf32>
    %16 = arith.mulf %14, %15 : vector<16x128xf32>
    %c0_8 = arith.constant 0 : index
    %c0_9 = arith.constant 0 : index
    %17 = vector.load %arg5[%c0_8, %c0_9] : memref<16x128xf32, #tpu.memory_space<vmem>>, vector<16x128xf32>
    tpu.vector_store %arg5[%c0_8, %c0_9], %16 {strides = array<i32>} : memref<16x128xf32, #tpu.memory_space<vmem>>, vector<16x128xf32>,
    return
  }
  func.func @transform_0(%arg0: i32) -> (i32, i32) {
    %c0_i32 = arith.constant 0 : i32
    %c0_i32_0 = arith.constant 0 : i32
    %c0_i32_1 = arith.constant 0 : i32
    return %c0_i32, %c0_i32_0 : i32, i32
  }
  func.func @transform_1(%arg0: i32) -> (i32, i32) {
    %c0_i32 = arith.constant 0 : i32
    %c0_i32_0 = arith.constant 0 : i32
    %c0_i32_1 = arith.constant 0 : i32
    return %c0_i32, %c0_i32_0 : i32, i32
  }
  func.func @transform_2(%arg0: i32) -> (i32, i32) {
    %c0_i32 = arith.constant 0 : i32
    %c0_i32_0 = arith.constant 0 : i32
    %c0_i32_1 = arith.constant 0 : i32
    return %c0_i32, %c0_i32_0 : i32, i32
  }
  func.func @transform_3(%arg0: i32) -> (i32, i32) {
    %c0_i32 = arith.constant 0 : i32
    %c0_i32_0 = arith.constant 0 : i32
    return %arg0, %c0_i32 : i32, i32
  }
  func.func @transform_4(%arg0: i32) -> (i32, i32) {
    %c0_i32 = arith.constant 0 : i32
    %c0_i32_0 = arith.constant 0 : i32
    return %arg0, %c0_i32 : i32, i32
  }
}

</mosaic_0001>

<llo_original>
// kernel: _fake_quantize_impl.3
$region0: #{_fake_quantize_impl.3}
  #allocation0 [shape = 'u32[]', space=smem, size = 0x4, offset = 0x4, fixed_abs, tag = 'smem constant byte address 0x4 - core index']
  #allocation1 [shape = 'u32[144,128]{1,0:T(1,128)}', space=vmem, size = 0x12000, scoped, tag = 'internal scratch']
  #allocation2 [shape = 'f32[1,1]{1,0:T(1,128)S(6)}', space=smem, size = 0x200, scoped, tag = 'scoped memory for _fake_quantize_impl.3']
  #allocation3 [shape = 'f32[1,1]{1,0:T(1,128)S(6)}', space=smem, size = 0x200, scoped, tag = 'scoped memory for _fake_quantize_impl.3']
  #allocation4 [shape = 'f32[1,1]{1,0:T(1,128)S(6)}', space=smem, size = 0x200, scoped, tag = 'scoped memory for _fake_quantize_impl.3']
  %s0 = inlined_call_operand.<no memory space> [shape: f32[1,1], index: 0, kind: input, shape index: {}]
  %s1 = inlined_call_operand.<no memory space> [shape: f32[1,1], index: 1, kind: input, shape index: {}]
  %s2 = inlined_call_operand.<no memory space> [shape: f32[1,1], index: 2, kind: input, shape index: {}]
  %s3 = inlined_call_operand.vmem [shape: f32[16,128], index: 3, kind: input, shape index: {}]
  %s4 = inlined_call_operand.vmem [shape: f32[16,128], index: 4, kind: output, shape index: {}]
  %s5 = sld [smem:[#allocation0]]
  $region26: #{_fake_quantize_impl.3} parent=0
    _
  %s7 = ssub.s32 1, %s5
  %s8 = scalar_select 0, %s7, %s5
  %9 = sst [smem:[#allocation2]] %s0
  %10 = sst [smem:[#allocation3]] %s1
  %11 = sst [smem:[#allocation4]] %s2
  // Predicated region
  $region2: #{_fake_quantize_impl.3} parent=0 // pred_check
    _
  $region3: #{_fake_quantize_impl.3} parent=0 // pred_check_branch
    %13 = sbr.rel (0) target = $region5
  $region4: #{_fake_quantize_impl.3} parent=0 // pred_region
    _
  $region5: #{_fake_quantize_impl.3} parent=0 // pred_fallthru
    _
  // Predicated region
  $region6: #{_fake_quantize_impl.3} parent=0 // pred_check
    _
  $region7: #{_fake_quantize_impl.3} parent=0 // pred_check_branch
    %15 = sbr.rel (0) target = $region9
  $region8: #{_fake_quantize_impl.3} parent=0 // pred_region
    _
  $region9: #{_fake_quantize_impl.3} parent=0 // pred_fallthru
    _
  // Predicated region
  $region10: #{_fake_quantize_impl.3} parent=0 // pred_check
    _
  $region11: #{_fake_quantize_impl.3} parent=0 // pred_check_branch
    %17 = sbr.rel (0) target = $region13
  $region12: #{_fake_quantize_impl.3} parent=0 // pred_region
    _
  $region13: #{_fake_quantize_impl.3} parent=0 // pred_fallthru
    _
  // Predicated region
  $region14: #{_fake_quantize_impl.3} parent=0 // pred_check
    _
  $region15: #{_fake_quantize_impl.3} parent=0 // pred_check_branch
    %19 = sbr.rel (0) target = $region17
  $region16: #{_fake_quantize_impl.3} parent=0 // pred_region
    _
  $region17: #{_fake_quantize_impl.3} parent=0 // pred_fallthru
    _
  %s20 = sld [smem:[#allocation2]]
  %s21 = sld [smem:[#allocation3]]
  %s22 = sld [smem:[#allocation4]]
  %v23 = vld [vmem:[%s3] sm:$0xff]
  %v24 = vld [vmem:[%s3 + $0x8] sm:$0xff]
  %v25 = vstv %s22
  %v26 = vmul.f32 %v23, %v25
  %v27 = vmul.f32 %v24, %v25
  %v28 = vstv %s21
  %v29 = vadd.f32 %v26, %v28
  %v30 = vadd.f32 %v27, %v28
  %v31 = vround.ne.pseudo %v29
  %v32 = vround.ne.pseudo %v30
  %v33 = vmax.f32 %v31, 0.0
  %v34 = vmax.f32 %v32, 0.0
  %v35 = vmin.f32 %v33, 255.0
  %v36 = vmin.f32 %v34, 255.0
  %v37 = vsub.f32 %v35, %v28
  %v38 = vsub.f32 %v36, %v28
  %v39 = vstv %s20
  %v40 = vmul.f32 %v37, %v39
  %v41 = vmul.f32 %v38, %v39
  %42 = vst [vmem:[%s4] sm:$0xff] %v40
  %43 = vst [vmem:[%s4 + $0x8] sm:$0xff] %v41
  // Predicated region
  $region18: #{_fake_quantize_impl.3} parent=0 // pred_check
    _
  $region19: #{_fake_quantize_impl.3} parent=0 // pred_check_branch
    %45 = sbr.rel (0) target = $region21
  $region20: #{_fake_quantize_impl.3} parent=0 // pred_region
    _
  $region21: #{_fake_quantize_impl.3} parent=0 // pred_fallthru
    _
  // Predicated region
  $region22: #{_fake_quantize_impl.3} parent=0 // pred_check
    _
  $region23: #{_fake_quantize_impl.3} parent=0 // pred_check_branch
    %47 = sbr.rel (0) target = $region25
  $region24: #{_fake_quantize_impl.3} parent=0 // pred_region
    _
  $region25: #{_fake_quantize_impl.3} parent=0 // pred_fallthru
    _

// kernel: _fake_quantize_impl.2
$region0: #{_fake_quantize_impl.2}
  #allocation0 [shape = 'u32[]', space=smem, size = 0x4, offset = 0x4, fixed_abs, tag = 'smem constant byte address 0x4 - core index']
  #allocation1 [shape = 'u32[144,128]{1,0:T(1,128)}', space=vmem, size = 0x12000, scoped, tag = 'internal scratch']
  #allocation2 [shape = 'f32[1,1]{1,0:T(1,128)}', space=vmem, size = 0x200, scoped, tag = 'scratch operand']
  #allocation3 [shape = 'f32[1,1]{1,0:T(1,128)}', space=vmem, size = 0x200, scoped, tag = 'scratch operand']
  #allocation4 [shape = 'f32[1,1]{1,0:T(1,128)S(6)}', space=smem, size = 0x200, scoped, tag = 'scoped memory for _fake_quantize_impl.2']
  #allocation5 [shape = 'f32[1,1]{1,0:T(1,128)S(6)}', space=smem, size = 0x200, scoped, tag = 'scoped memory for _fake_quantize_impl.2']
  %s0 = inlined_call_operand.<no memory space> [shape: f32[1,1], index: 0, kind: input, shape index: {}]
  %s1 = inlined_call_operand.<no memory space> [shape: f32[1,1], index: 1, kind: input, shape index: {}]
  %s2 = inlined_call_operand.vmem [shape: f32[16,128], index: 2, kind: input, shape index: {}]
  %s3 = inlined_call_operand.hbm [shape: f32[1,1], index: 3, kind: output, shape index: {0}]
  %s4 = inlined_call_operand.hbm [shape: f32[1,1], index: 4, kind: output, shape index: {1}]
  %s5 = inlined_call_operand.hbm [shape: f32[1,1], index: 5, kind: output, shape index: {2}]
  %s6 = inlined_call_operand.hbm [shape: f32[1,1], index: 6, kind: output, shape index: {3}]
  %s7 = inlined_call_operand.hbm [shape: f32[1,1], index: 7, kind: output, shape index: {4}]
  %8 = xla_tuple %s3, %s4, %s5, %s6, %s7
  %s9 = sld [smem:[#allocation0]]
  $region62: #{_fake_quantize_impl.2} parent=0
    _
  %s11 = ssub.s32 1, %s9
  %s12 = scalar_select 0, %s11, %s9
  %13 = sst [smem:[#allocation4]] %s0
  %14 = sst [smem:[#allocation5]] %s1
  $region1: #{_fake_quantize_impl.2} parent=0
    #allocation6 [shape = 'u8[512]{0}', space=vmem, size = 0x400, scoped, tag = 'output window, operand 0, single buffered']
    #allocation7 [shape = 's32[1]{0}', space=sflag, size = 0x4, scoped, tag = 'scoped memory for _fake_quantize_impl.2']
    #allocation8 [shape = 'u8[512]{0}', space=vmem, size = 0x400, scoped, tag = 'output window, operand 1, single buffered']
    #allocation9 [shape = 's32[1]{0}', space=sflag, size = 0x4, scoped, tag = 'scoped memory for _fake_quantize_impl.2']
    #allocation10 [shape = 'u8[512]{0}', space=vmem, size = 0x400, scoped, tag = 'output window, operand 2, single buffered']
    #allocation11 [shape = 'u8[512]{0}', space=vmem, size = 0x400, scoped, tag = 'output window, operand 3, single buffered']
    #allocation12 [shape = 's32[1]{0}', space=sflag, size = 0x4, scoped, tag = 'scoped memory for _fake_quantize_impl.2']
    #allocation13 [shape = 'u8[512]{0}', space=vmem, size = 0x400, scoped, tag = 'output window, operand 4, single buffered']
    %15 = vsyncpa [#allocation7], 0
    %16 = vsyncpa [#allocation9], 0
    %17 = vsyncpa [#allocation12], 0
    // Predicated region
    $region2: #{_fake_quantize_impl.2} parent=1 // pred_check
      _
    $region3: #{_fake_quantize_impl.2} parent=1 // pred_check_branch
      %19 = sbr.rel (0) target = $region5
    $region4: #{_fake_quantize_impl.2} parent=1 // pred_region
      _
    $region5: #{_fake_quantize_impl.2} parent=1 // pred_fallthru
      _
    // Predicated region
    $region6: #{_fake_quantize_impl.2} parent=1 // pred_check
      _
    $region7: #{_fake_quantize_impl.2} parent=1 // pred_check_branch
      %21 = sbr.rel (0) target = $region9
    $region8: #{_fake_quantize_impl.2} parent=1 // pred_region
      _
    $region9: #{_fake_quantize_impl.2} parent=1 // pred_fallthru
      _
    // Predicated region
    $region10: #{_fake_quantize_impl.2} parent=1 // pred_check
      _
    $region11: #{_fake_quantize_impl.2} parent=1 // pred_check_branch
      %23 = sbr.rel (0) target = $region13
    $region12: #{_fake_quantize_impl.2} parent=1 // pred_region
      _
    $region13: #{_fake_quantize_impl.2} parent=1 // pred_fallthru
      _
    %p24 = scmp.eq.s32.totalorder 0, 0
    // Predicated region
    $region14: #{_fake_quantize_impl.2} parent=1 // pred_check
      %p25 = pneg %p24
    $region15: #{_fake_quantize_impl.2} parent=1 // pred_check_branch
      %27 = sbr.rel (%p25) target = $region17
    $region16: #{_fake_quantize_impl.2} parent=1 // pred_region
      %vm28 = vcmask 0
      %29 = vst.msk [vmem:[#allocation2] sm:$0x1] %vm28, inf
      %30 = vst.msk [vmem:[#allocation3] sm:$0x1] %vm28, -inf
    $region17: #{_fake_quantize_impl.2} parent=1 // pred_fallthru
      _
    %v31 = vld [vmem:[%s2] sm:$0xff]
    %v32 = vld [vmem:[%s2 + $0x8] sm:$0xff]
    %v33 = vld [vmem:[#allocation2] sm:$0x1]
    %v34 = vmin.f32 %v31, %v32
    %35 = vmin.xlane.f32.xlu0 %v34
    %v36 = vpop.xlane.xlu0 %35
    %v37 = vrot.slane %v36, 4
    %v38 = vmin.f32 %v36, %v37
    %v39 = vrot.slane %v38, 2
    %v40 = vmin.f32 %v38, %v39
    %v41 = vrot.slane %v40, 1
    %v42 = vmin.f32 %v40, %v41
    %s43 = vtos %v42
    %v44 = vstv %s43
    %v45 = vmin.f32 %v33, %v44
    %vm46 = vcmask 0
    %47 = vst.msk [vmem:[#allocation2] sm:$0x1] %vm46, %v45
    %v48 = vld [vmem:[#allocation3] sm:$0x1]
    %v49 = vmax.f32 %v31, %v32
    %50 = vmax.xlane.f32.xlu0 %v49
    %v51 = vpop.xlane.xlu0 %50
    %v52 = vrot.slane %v51, 4
    %v53 = vmax.f32 %v51, %v52
    %v54 = vrot.slane %v53, 2
    %v55 = vmax.f32 %v53, %v54
    %v56 = vrot.slane %v55, 1
    %v57 = vmax.f32 %v55, %v56
    %s58 = vtos %v57
    %v59 = vstv %s58
    %v60 = vmax.f32 %v48, %v59
    %61 = vst.msk [vmem:[#allocation3] sm:$0x1] %vm46, %v60
    // Predicated region
    $region18: #{_fake_quantize_impl.2} parent=1 // pred_check
      %p62 = pneg %p24
    $region19: #{_fake_quantize_impl.2} parent=1 // pred_check_branch
      %64 = sbr.rel (%p62) target = $region21
    $region20: #{_fake_quantize_impl.2} parent=1 // pred_region
      %v65 = vld [vmem:[#allocation2] sm:$0x1]
      %v66 = vld [vmem:[#allocation3] sm:$0x1]
      %s67 = sld [smem:[#allocation4]]
      %v68 = vstv %s67
      %s69 = sld [smem:[#allocation5]]
      %v70 = vstv %s69
      %v71 = vand.u32 2147483647, %v68
      %vm72 = vcmp.eq.f32.partialorder %v71, inf
      %v73 = vsub.f32 %v65, %v68
      %v74 = vmul.f32 %v73, 0.01
      %v75 = vadd.f32 %v68, %v74
      %v76 = vsel %vm72, %v65, %v75
      %v77 = vand.u32 2147483647, %v70
      %vm78 = vcmp.eq.f32.partialorder %v77, inf
      %v79 = vsub.f32 %v66, %v70
      %v80 = vmul.f32 %v79, 0.01
      %v81 = vadd.f32 %v70, %v80
      %v82 = vsel %vm78, %v66, %v81
      %v83 = vmin.f32 %v76, 0.0
      %v84 = vmax.f32 %v82, 0.0
      %v85 = vsub.f32 %v84, %v83
      %v86 = vrcp.pop 255.0
      %v87 = vmul.f32 %v85, %v86
      %v88 = vmax.f32 %v87, 1.1920929e-07
      %v89 = vrcp.pop %v88
      %v90 = vmul.f32 %v83, %v89
      %v91 = vround.ne.pseudo %v90
      %v92 = vsub.f32 0.0, %v91
      %v93 = vmax.f32 %v92, 0.0
      %v94 = vmin.f32 %v93, 255.0
      %95 = vst.msk [vmem:[#allocation6] sm:$0x1] %vm46, %v88
      %96 = vst.msk [vmem:[#allocation8] sm:$0x1] %vm46, %v94
      %v97 = vmul.f32 1.0, %v89
      %98 = vst.msk [vmem:[#allocation10] sm:$0x1] %vm46, %v97
      %99 = vst.msk [vmem:[#allocation11] sm:$0x1] %vm46, %v76
      %100 = vst.msk [vmem:[#allocation13] sm:$0x1] %vm46, %v82
    $region21: #{_fake_quantize_impl.2} parent=1 // pred_fallthru
      _
    // Predicated region
    $region22: #{_fake_quantize_impl.2} parent=1 // pred_check
      _
    $region23: #{_fake_quantize_impl.2} parent=1 // pred_check_branch
      %102 = sbr.rel (0) target = $region25
    $region24: #{_fake_quantize_impl.2} parent=1 // pred_region
      %s104 = ssub.s32 16, 16
      %105 = vsyncadd [#allocation7], %s104
      %s107 = sshll.u32 [#allocation6], 4
      %s108 = int_to_ptr.vmem [resolvable:$true] %s107
      %110 = dma.vmem_to_hbm [thread:$0]  %s108, 16, %s3, [#allocation7]
    $region25: #{_fake_quantize_impl.2} parent=1 // pred_fallthru
      _
    // Predicated region
    $region26: #{_fake_quantize_impl.2} parent=1 // pred_check
      _
    $region27: #{_fake_quantize_impl.2} parent=1 // pred_check_branch
      %112 = sbr.rel (0) target = $region29
    $region28: #{_fake_quantize_impl.2} parent=1 // pred_region
      %s114 = ssub.s32 16, 16
      %115 = vsyncadd [#allocation9], %s114
      %s117 = sshll.u32 [#allocation8], 4
      %s118 = int_to_ptr.vmem [resolvable:$true] %s117
      %120 = dma.vmem_to_hbm [thread:$0]  %s118, 16, %s4, [#allocation9]
    $region29: #{_fake_quantize_impl.2} parent=1 // pred_fallthru
      _
    // Predicated region
    $region30: #{_fake_quantize_impl.2} parent=1 // pred_check
      _
    $region31: #{_fake_quantize_impl.2} parent=1 // pred_check_branch
      %122 = sbr.rel (0) target = $region33
    $region32: #{_fake_quantize_impl.2} parent=1 // pred_region
      %s124 = ssub.s32 16, 16
      %125 = vsyncadd [#allocation9], %s124
      %s127 = sshll.u32 [#allocation10], 4
      %s128 = int_to_ptr.vmem [resolvable:$true] %s127
      %130 = dma.vmem_to_hbm [thread:$0]  %s128, 16, %s5, [#allocation9]
    $region33: #{_fake_quantize_impl.2} parent=1 // pred_fallthru
      _
    // Predicated region
    $region34: #{_fake_quantize_impl.2} parent=1 // pred_check
      _
    $region35: #{_fake_quantize_impl.2} parent=1 // pred_check_branch
      %132 = sbr.rel (0) target = $region37
    $region36: #{_fake_quantize_impl.2} parent=1 // pred_region
      %s134 = ssub.s32 16, 16
      %135 = vsyncadd [#allocation12], %s134
      %s137 = sshll.u32 [#allocation11], 4
      %s138 = int_to_ptr.vmem [resolvable:$true] %s137
      %140 = dma.vmem_to_hbm [thread:$0]  %s138, 16, %s6, [#allocation12]
    $region37: #{_fake_quantize_impl.2} parent=1 // pred_fallthru
      _
    // Predicated region
    $region38: #{_fake_quantize_impl.2} parent=1 // pred_check
      _
    $region39: #{_fake_quantize_impl.2} parent=1 // pred_check_branch
      %142 = sbr.rel (0) target = $region41
    $region40: #{_fake_quantize_impl.2} parent=1 // pred_region
      %s144 = ssub.s32 16, 16
      %145 = vsyncadd [#allocation12], %s144
      %s147 = sshll.u32 [#allocation13], 4
      %s148 = int_to_ptr.vmem [resolvable:$true] %s147
      %150 = dma.vmem_to_hbm [thread:$0]  %s148, 16, %s7, [#allocation12]
    $region41: #{_fake_quantize_impl.2} parent=1 // pred_fallthru
      _
    // Predicated region
    $region42: #{_fake_quantize_impl.2} parent=1 // pred_check
      _
    $region43: #{_fake_quantize_impl.2} parent=1 // pred_check_branch
      %152 = sbr.rel (0) target = $region45
    $region44: #{_fake_quantize_impl.2} parent=1 // pred_region
      %153 = dma.done [#allocation7], 16
    $region45: #{_fake_quantize_impl.2} parent=1 // pred_fallthru
      _
    // Predicated region
    $region46: #{_fake_quantize_impl.2} parent=1 // pred_check
      _
    $region47: #{_fake_quantize_impl.2} parent=1 // pred_check_branch
      %155 = sbr.rel (0) target = $region49
    $region48: #{_fake_quantize_impl.2} parent=1 // pred_region
      %156 = dma.done [#allocation9], 16
    $region49: #{_fake_quantize_impl.2} parent=1 // pred_fallthru
      _
    // Predicated region
    $region50: #{_fake_quantize_impl.2} parent=1 // pred_check
      _
    $region51: #{_fake_quantize_impl.2} parent=1 // pred_check_branch
      %158 = sbr.rel (0) target = $region53
    $region52: #{_fake_quantize_impl.2} parent=1 // pred_region
      %159 = dma.done [#allocation9], 16
    $region53: #{_fake_quantize_impl.2} parent=1 // pred_fallthru
      _
    // Predicated region
    $region54: #{_fake_quantize_impl.2} parent=1 // pred_check
      _
    $region55: #{_fake_quantize_impl.2} parent=1 // pred_check_branch
      %161 = sbr.rel (0) target = $region57
    $region56: #{_fake_quantize_impl.2} parent=1 // pred_region
      %162 = dma.done [#allocation12], 16
    $region57: #{_fake_quantize_impl.2} parent=1 // pred_fallthru
      _
    // Predicated region
    $region58: #{_fake_quantize_impl.2} parent=1 // pred_check
      _
    $region59: #{_fake_quantize_impl.2} parent=1 // pred_check_branch
      %164 = sbr.rel (0) target = $region61
    $region60: #{_fake_quantize_impl.2} parent=1 // pred_region
      %165 = dma.done [#allocation12], 16
    $region61: #{_fake_quantize_impl.2} parent=1 // pred_fallthru
      _
    %166 = vsyncpa [#allocation7], 1
    %167 = vsyncpa [#allocation9], 1
    %168 = vsyncpa [#allocation12], 1

</llo_original>
